<compile_context>
chip_gen: v7x
topology: tpu7x:2x2x1
jax: 0.10.0
libtpu: 0.0.40
codegen_flags: <defaults>
</compile_context>

<pallas_src>
import functools

import jax
import jax.numpy as jnp
from jax.experimental import pallas as pl
from jax.experimental.pallas import tpu as pltpu

# torchvision rgb_to_grayscale weights (ITU-R 601)
GRAY_W = (0.2989, 0.587, 0.114)


def complexity_kernel(x3_ref, comp_ref, *, hw):
    """Per-image grayscale variance, min/max-normalized across the batch.

    x3_ref:   (B, 3, HW) f32 (first 3 channels only)
    comp_ref: (B, 1)     f32 complexity score per image
    """
    x3 = x3_ref[...]                                          # (B, 3, HW)
    # TODO(synk): torchvision Grayscale is only defined for 1/3-channel inputs;
    # we apply its RGB weights to the first 3 channels (assumes C >= 3).
    gray = (GRAY_W[0] * x3[:, 0, :]
            + GRAY_W[1] * x3[:, 1, :]
            + GRAY_W[2] * x3[:, 2, :])                        # (B, HW)
    g_mean = jnp.mean(gray, axis=-1, keepdims=True)           # (B, 1)
    # torch.var over (H, W) with default correction=1 (unbiased)
    var = jnp.sum((gray - g_mean) ** 2, axis=-1, keepdims=True) / (hw - 1)
    v_max = jnp.max(var)
    v_min = jnp.min(var)
    comp_ref[...] = (var - v_min) / (v_max - v_min + 1e-5)    # (B, 1)


def se_apply_kernel(comp_ref, x_ref, w1t_ref, w2t_ref, o_ref):
    """One image per grid step: squeeze-excite gate * complexity, applied to x.

    comp_ref: (B, 1) f32 in SMEM (whole array, scalar-indexed)
    x_ref:    (1, C, HW) f32 VMEM block for image b
    w1t_ref:  (C, C_r) f32 (pre-transposed Linear1 weight)
    w2t_ref:  (C_r, C) f32 (pre-transposed Linear2 weight)
    o_ref:    (1, C, HW)
    """
    b = pl.program_id(0)
    x = x_ref[...]                                            # (1, C, HW)

    # --- squeeze: AdaptiveAvgPool2d(1) -------------------------------------
    pooled = jnp.mean(x, axis=-1)                             # (1, C)

    # --- excitation: Linear(C->C/r) -> ReLU -> Linear(C/r->C) -> Sigmoid ---
    # Weights are already transposed in the wrapper (loop-invariant), so the
    # matmuls consume the native layout with no in-kernel relayout.
    h = jnp.maximum(
        jnp.dot(pooled, w1t_ref[...], preferred_element_type=jnp.float32), 0.0)
    y = jax.nn.sigmoid(
        jnp.dot(h, w2t_ref[...], preferred_element_type=jnp.float32))     # (1, C)

    # --- per-image scalar complexity gate + broadcast multiply -------------
    gate = y * comp_ref[b, 0]                                 # (1, C)
    o_ref[...] = (x * gate[:, :, None]).astype(o_ref.dtype)


def se_attention(x, w1, w2):
    """x: (B, C, H, W) NCHW float32; w1: (C//r, C); w2: (C, C//r) (PyTorch layout)."""
    b, c, hh, ww = x.shape
    hw = hh * ww
    cr = w1.shape[0]
    x_flat = x.reshape(b, c, hw)

    # ---------------- stats pre-pass (tiny: only 3 channels) ----------------
    # TODO(synk): for very large B*HW, grid this pre-pass over batch with a
    # scratch accumulator; at small-object-attention sizes it is negligible.
    x3 = x_flat[:, :3, :]                                     # (B, 3, HW)
    comp = pl.pallas_call(
        functools.partial(complexity_kernel, hw=hw),
        out_shape=jax.ShapeDtypeStruct((b, 1), jnp.float32),
        in_specs=[pl.BlockSpec(memory_space=pltpu.MemorySpace.VMEM)],
        out_specs=pl.BlockSpec(memory_space=pltpu.MemorySpace.VMEM),
    )(x3)

    # ---------------- main pass: gridded over batch, pipelined --------------
    # Pre-transpose weights once (loop-invariant) so the kernel never does .T.
    w1t = w1.T                                                # (C, C_r)
    w2t = w2.T                                                # (C_r, C)

    # TODO(synk): for very large C*H*W, additionally block the spatial axis
    # (two-pass pool then multiply) to keep per-step VMEM blocks small.
    out = pl.pallas_call(
        se_apply_kernel,
        out_shape=jax.ShapeDtypeStruct((b, c, hw), x.dtype),
        grid=(b,),
        in_specs=[
            # complexity scores: whole (B, 1) array resident in SMEM
            pl.BlockSpec(memory_space=pltpu.MemorySpace.SMEM),
            # one image per grid step, double-buffered HBM<->VMEM
            pl.BlockSpec((1, c, hw), lambda i: (i, 0, 0)),
            # small loop-invariant FC weights, kept resident in VMEM
            pl.BlockSpec((c, cr), lambda i: (0, 0)),
            pl.BlockSpec((cr, c), lambda i: (0, 0)),
        ],
        out_specs=pl.BlockSpec((1, c, hw), lambda i: (i, 0, 0)),
        compiler_params=pltpu.CompilerParams(
            dimension_semantics=("parallel",),     # megacore sharding on v7x
            vmem_limit_bytes=32 * 1024 * 1024,     # safe on v5e/v6e/v7x
        ),
    )(comp, x_flat, w1t, w2t)
    return out.reshape(b, c, hh, ww)


def se_attention_ref(x, w1, w2):
    """Pure-JAX reference matching the PyTorch forward."""
    bsz, c, hh, ww = x.shape
    hw = hh * ww
    gray = (GRAY_W[0] * x[:, 0] + GRAY_W[1] * x[:, 1] + GRAY_W[2] * x[:, 2])
    gray = gray.reshape(bsz, hw)
    var = jnp.var(gray, axis=-1, ddof=1).reshape(bsz, 1)
    comp = (var - jnp.min(var)) / (jnp.max(var) - jnp.min(var) + 1e-5)
    pooled = jnp.mean(x.reshape(bsz, c, hw), axis=-1)
    h = jnp.maximum(pooled @ w1.T, 0.0)
    y = jax.nn.sigmoid(h @ w2.T)
    gate = y * comp
    return x * gate[:, :, None, None]


if __name__ == "__main__":
    B, C, H, W = 2, 16, 16, 16
    reduction = 4
    C_r = C // reduction

    key = jax.random.PRNGKey(0)
    kx, k1, k2 = jax.random.split(key, 3)
    x = jax.random.normal(kx, (B, C, H, W), dtype=jnp.float32)
    # Deterministic synthetic Linear weights (PyTorch Linear stores (out, in), bias=False).
    w1 = 0.05 * jax.random.normal(k1, (C_r, C), dtype=jnp.float32)
    w2 = 0.05 * jax.random.normal(k2, (C, C_r), dtype=jnp.float32)

    out = se_attention(x, w1, w2)
    jax.block_until_ready(out)
    assert out.shape == (B, C, H, W) and out.dtype == jnp.float32

    ref = se_attention_ref(x, w1, w2)
    assert jnp.allclose(out, ref, atol=1e-3, rtol=1e-3), "mismatch vs reference"
    print("KERNEL_OK")
</pallas_src>

<mosaic_0001>
module attributes {stable_mosaic.version = 11 : i64} {
  func.func @complexity_kernel(%arg0: memref<2x3x256xf32, #tpu.memory_space<vmem>>, %arg1: memref<2x1xf32, #tpu.memory_space<vmem>>) attributes {dimension_semantics = [], scalar_prefetch = 0 : i64, scratch_operands = 0 : i64, tpu.core_type = #tpu.core_type<tc>} {
    %c0 = arith.constant 0 : index
    %c0_0 = arith.constant 0 : index
    %c0_1 = arith.constant 0 : index
    %0 = vector.load %arg0[%c0, %c0_0, %c0_1] : memref<2x3x256xf32, #tpu.memory_space<vmem>>, vector<2x3x256xf32>
    %1 = vector.extract_strided_slice %0 {offsets = [0, 0, 0], sizes = [2, 1, 256], strides = [1, 1, 1]} : vector<2x3x256xf32> to vector<2x1x256xf32>
    %2 = vector.shape_cast %1 : vector<2x1x256xf32> to vector<2x256xf32>
    %cst = arith.constant 2.989000e-01 : f32
    %3 = vector.broadcast %cst : f32 to vector<2x256xf32>
    %4 = arith.mulf %3, %2 : vector<2x256xf32>
    %5 = vector.extract_strided_slice %0 {offsets = [0, 1, 0], sizes = [2, 1, 256], strides = [1, 1, 1]} : vector<2x3x256xf32> to vector<2x1x256xf32>
    %6 = vector.shape_cast %5 : vector<2x1x256xf32> to vector<2x256xf32>
    %cst_2 = arith.constant 5.870000e-01 : f32
    %7 = vector.broadcast %cst_2 : f32 to vector<2x256xf32>
    %8 = arith.mulf %7, %6 : vector<2x256xf32>
    %9 = arith.addf %4, %8 : vector<2x256xf32>
    %10 = vector.extract_strided_slice %0 {offsets = [0, 2, 0], sizes = [2, 1, 256], strides = [1, 1, 1]} : vector<2x3x256xf32> to vector<2x1x256xf32>
    %11 = vector.shape_cast %10 : vector<2x1x256xf32> to vector<2x256xf32>
    %cst_3 = arith.constant 1.140000e-01 : f32
    %12 = vector.broadcast %cst_3 : f32 to vector<2x256xf32>
    %13 = arith.mulf %12, %11 : vector<2x256xf32>
    %14 = arith.addf %9, %13 : vector<2x256xf32>
    %cst_4 = arith.constant dense<0.000000e+00> : vector<2xf32>
    %15 = vector.multi_reduction <add>, %14, %cst_4 [1] : vector<2x256xf32> to vector<2xf32>
    %16 = vector.shape_cast %15 : vector<2xf32> to vector<2x1xf32>
    %cst_5 = arith.constant 2.560000e+02 : f32
    %17 = vector.broadcast %cst_5 : f32 to vector<2x1xf32>
    %18 = arith.divf %16, %17 : vector<2x1xf32>
    %19 = vector.broadcast %18 : vector<2x1xf32> to vector<2x256xf32>
    %20 = arith.subf %14, %19 : vector<2x256xf32>
    %21 = arith.mulf %20, %20 : vector<2x256xf32>
    %cst_6 = arith.constant dense<0.000000e+00> : vector<2xf32>
    %22 = vector.multi_reduction <add>, %21, %cst_6 [1] : vector<2x256xf32> to vector<2xf32>
    %23 = vector.shape_cast %22 : vector<2xf32> to vector<2x1xf32>
    %cst_7 = arith.constant 2.550000e+02 : f32
    %24 = vector.broadcast %cst_7 : f32 to vector<2x1xf32>
    %25 = arith.divf %23, %24 : vector<2x1xf32>
    %26 = vector.shape_cast %25 : vector<2x1xf32> to vector<1x2x1xf32>
    %cst_8 = arith.constant dense<0xFF800000> : vector<1xf32>
    %27 = vector.multi_reduction <maximumf>, %26, %cst_8 [1, 2] : vector<1x2x1xf32> to vector<1xf32>
    %28 = vector.shape_cast %27 : vector<1xf32> to vector<1x1x1xf32>
    %29 = vector.extract %28[0, 0, 0] : f32 from vector<1x1x1xf32>
    %30 = vector.shape_cast %25 : vector<2x1xf32> to vector<1x2x1xf32>
    %cst_9 = arith.constant dense<0x7F800000> : vector<1xf32>
    %31 = vector.multi_reduction <minimumf>, %30, %cst_9 [1, 2] : vector<1x2x1xf32> to vector<1xf32>
    %32 = vector.shape_cast %31 : vector<1xf32> to vector<1x1x1xf32>
    %33 = vector.extract %32[0, 0, 0] : f32 from vector<1x1x1xf32>
    %34 = vector.broadcast %33 : f32 to vector<2x1xf32>
    %35 = arith.subf %25, %34 : vector<2x1xf32>
    %36 = arith.subf %29, %33 : f32
    %cst_10 = arith.constant 9.99999974E-6 : f32
    %37 = arith.addf %36, %cst_10 : f32
    %38 = vector.broadcast %37 : f32 to vector<2x1xf32>
    %39 = arith.divf %35, %38 : vector<2x1xf32>
    %c0_11 = arith.constant 0 : index
    %c0_12 = arith.constant 0 : index
    %40 = vector.load %arg1[%c0_11, %c0_12] : memref<2x1xf32, #tpu.memory_space<vmem>>, vector<2x1xf32>
    tpu.vector_store %arg1[%c0_11, %c0_12], %39 {strides = array<i32>} : memref<2x1xf32, #tpu.memory_space<vmem>>, vector<2x1xf32>,
    return
  }
}

</mosaic_0001>

<llo_original>
// kernel: tpu_custom_call.1
$region0: #{tpu_custom_call.1}
  #allocation0 [shape = 'u32[]', space=smem, size = 0x4, offset = 0x4, fixed_abs, tag = 'smem constant byte address 0x4 - core index']
  #allocation1 [shape = 'u32[144,128]{1,0:T(1,128)}', space=vmem, size = 0x12000, scoped, tag = 'internal scratch']
  %s0 = inlined_call_operand.vmem [shape: f32[2,3,256], index: 0, kind: input, shape index: {}]
  %s1 = inlined_call_operand.vmem [shape: f32[2,1], index: 1, kind: output, shape index: {}]
  %s2 = sld [smem:[#allocation0]]
  $region14: #{tpu_custom_call.1} parent=0
    _
  %s4 = ssub.s32 1, %s2
  %s5 = scalar_select 0, %s4, %s2
  // Predicated region
  $region2: #{tpu_custom_call.1} parent=0 // pred_check
    _
  $region3: #{tpu_custom_call.1} parent=0 // pred_check_branch
    %7 = sbr.rel (0) target = $region5
  $region4: #{tpu_custom_call.1} parent=0 // pred_region
    _
  $region5: #{tpu_custom_call.1} parent=0 // pred_fallthru
    _
  %v8 = vld [vmem:[%s0] sm:$0x77]
  %v9 = vld [vmem:[%s0 + $0x8] sm:$0x77]
  %v10 = vmul.f32 %v8, 0.2989
  %v11 = vmul.f32 %v9, 0.2989
  %v12 = vmul.f32 %v8, 0.587
  %v13 = vmul.f32 %v9, 0.587
  %v16 = vrot.slane %v12, 5
  %v17 = vrot.slane %v16, 4
  %v18 = vrot.slane %v13, 5
  %v19 = vrot.slane %v18, 4
  %v22 = vadd.f32 %v10, %v17
  %v23 = vadd.f32 %v11, %v19
  %v24 = vmul.f32 %v8, 0.114
  %v25 = vmul.f32 %v9, 0.114
  %v28 = vrot.slane %v24, 6
  %v29 = vrot.slane %v28, 4
  %v30 = vrot.slane %v25, 6
  %v31 = vrot.slane %v30, 4
  %v34 = vadd.f32 %v22, %v29
  %v35 = vadd.f32 %v23, %v31
  %v38 = vlaneseq
  %v39 = vshrl.u32 %v38, 7
  %v40 = vsub.s32 0, %v39
  %v41 = vrot.slane %v34, %v40
  %v42 = vlaneseq
  %v43 = vshrl.u32 %v42, 7
  %v44 = vsub.s32 4, %v43
  %v45 = vrot.slane %v34, %v44
  %v46 = vlaneseq
  %v47 = vshrl.u32 %v46, 7
  %v48 = vsub.s32 0, %v47
  %v49 = vrot.slane %v35, %v48
  %v50 = vlaneseq
  %v51 = vshrl.u32 %v50, 7
  %v52 = vsub.s32 4, %v51
  %v53 = vrot.slane %v35, %v52
  %vm54 = vcmask 1041409
  %v55 = vsel %vm54, %v49, %v41
  %v56 = vsel %vm54, %v53, %v45
  %vm59 = vcmask 1041408
  %v60 = vsel %vm59, %v55, 0.0
  %v61 = vsel %vm59, %v56, 0.0
  %v62 = vadd.f32 %v60, %v61
  %63 = vadd.xlane.f32.xlu0 %v62
  %v64 = vpop.xlane.xlu0 %63
  %v65 = vrcp.pop 256.0
  %v66 = vmul.f32 %v64, %v65
  %v69 = vunpack.c.l.s4 839922192
  %v70 = vunpack.c.0.s8 %v69
  %v71 = vlaneseq
  %v72 = vshrl.u32 %v71, 7
  %v73 = vsub.s32 %v70, %v72
  %v74 = vrot.slane %v66, %v73
  %v75 = vrot.slane %v74, 1
  %v78 = vsub.f32 %v34, %v74
  %v79 = vsub.f32 %v35, %v75
  %v80 = vmul.f32 %v78, %v78
  %v81 = vmul.f32 %v79, %v79
  %v84 = vlaneseq
  %v85 = vshrl.u32 %v84, 7
  %v86 = vsub.s32 0, %v85
  %v87 = vrot.slane %v80, %v86
  %v88 = vlaneseq
  %v89 = vshrl.u32 %v88, 7
  %v90 = vsub.s32 4, %v89
  %v91 = vrot.slane %v80, %v90
  %v92 = vlaneseq
  %v93 = vshrl.u32 %v92, 7
  %v94 = vsub.s32 0, %v93
  %v95 = vrot.slane %v81, %v94
  %v96 = vlaneseq
  %v97 = vshrl.u32 %v96, 7
  %v98 = vsub.s32 4, %v97
  %v99 = vrot.slane %v81, %v98
  %v100 = vsel %vm54, %v95, %v87
  %v101 = vsel %vm54, %v99, %v91
  %v104 = vsel %vm59, %v100, 0.0
  %v105 = vsel %vm59, %v101, 0.0
  %v106 = vadd.f32 %v104, %v105
  %107 = vadd.xlane.f32.xlu0 %v106
  %v108 = vpop.xlane.xlu0 %107
  %v109 = vrcp.pop 255.0
  %v110 = vmul.f32 %v108, %v109
  %v111 = vsel %vm59, %v110, -inf
  %v112 = vrot.slane %v111, 4
  %v113 = vmax.f32 %v111, %v112
  %v114 = vrot.slane %v113, 2
  %v115 = vmax.f32 %v113, %v114
  %v116 = vrot.slane %v115, 1
  %v117 = vmax.f32 %v115, %v116
  %s118 = vtos %v117
  %v119 = vsel %vm59, %v110, inf
  %v120 = vrot.slane %v119, 4
  %v121 = vmin.f32 %v119, %v120
  %v122 = vrot.slane %v121, 2
  %v123 = vmin.f32 %v121, %v122
  %v124 = vrot.slane %v123, 1
  %v125 = vmin.f32 %v123, %v124
  %s126 = vtos %v125
  %v127 = vstv %s126
  %v128 = vsub.f32 %v110, %v127
  %s129 = ssub.f32 %s118, %s126
  %s130 = sadd.f32 %s129, 1e-05
  %v131 = vstv %s130
  %v132 = vrcp.pop %v131
  %v133 = vmul.f32 %v128, %v132
  %vm134 = vcmask 1024
  %135 = vst.msk [vmem:[%s1] sm:$0x3] %vm134, %v133
  // Predicated region
  $region6: #{tpu_custom_call.1} parent=0 // pred_check
    _
  $region7: #{tpu_custom_call.1} parent=0 // pred_check_branch
    %137 = sbr.rel (0) target = $region9
  $region8: #{tpu_custom_call.1} parent=0 // pred_region
    _
  $region9: #{tpu_custom_call.1} parent=0 // pred_fallthru
    _
  // Predicated region
  $region10: #{tpu_custom_call.1} parent=0 // pred_check
    _
  $region11: #{tpu_custom_call.1} parent=0 // pred_check_branch
    %139 = sbr.rel (0) target = $region13
  $region12: #{tpu_custom_call.1} parent=0 // pred_region
    _
  $region13: #{tpu_custom_call.1} parent=0 // pred_fallthru
    _

</llo_original>
